<compile_context>
chip_gen: v5e
topology: v5e:2x2
jax: 0.10.0
libtpu: 0.0.40
codegen_flags: <defaults>
</compile_context>

<pallas_src>
import math
import jax
import jax.numpy as jnp
from jax.experimental import pallas as pl
from jax.experimental.pallas import tpu as pltpu

EPS = 1e-5
NUM_EMOTIONS = 6
N_PAD = 128            # lane-dense padded output width (>= NUM_EMOTIONS)


def _round_up(a, m):
    return -(-a // m) * m


def _padded_block_bytes(shape, dtype):
    """VMEM footprint of one block including (sublane, 128-lane) tile padding."""
    itemsize = jnp.dtype(dtype).itemsize
    shape = tuple(shape)
    if len(shape) == 1:
        shape = (1,) + shape
    sub = 8 * max(1, 4 // itemsize)          # 8 sublanes for f32, 16 for bf16
    lead = 1
    for d in shape[:-2]:
        lead *= d
    rows = _round_up(shape[-2], sub)
    cols = _round_up(shape[-1], 128)
    return lead * rows * cols * itemsize


def _estimate_vmem(TB, S, D, mm_dtype):
    f32 = jnp.float32
    b = 0
    b += 2 * _padded_block_bytes((TB, S, D), mm_dtype)      # x blocks (double-buffered)
    b += 2 * _padded_block_bytes((TB, N_PAD), f32)          # out blocks (double-buffered)
    for shp, dt in (((S, 1), f32), ((S, S), f32), ((D, S), mm_dtype),
                    ((S * S, N_PAD), mm_dtype), ((1, N_PAD), f32)):
        b += 2 * _padded_block_bytes(shp, dt)               # grid-invariant operands
    # in-kernel temporaries: raw matmul output, scaled/biased h, flattened h
    b += _padded_block_bytes((TB * S, S), f32)
    b += _padded_block_bytes((TB, S, S), f32)
    b += _padded_block_bytes((TB, S * S), mm_dtype)
    b += 2 << 20                                            # headroom
    return b


def decoder_kernel(x_ref, scale_ref, bias1_ref, w1t_ref, w2p_ref, b2p_ref, out_ref):
    TB, S, D = x_ref.shape
    mm_dtype = w1t_ref.dtype

    # ---- linear1 on the raw (un-normalized) input: ONE (TB*S, D) x (D, S) MXU matmul.
    x2 = x_ref[...].reshape(TB * S, D)                       # leading-dim merge: free
    raw = jnp.dot(x2, w1t_ref[...], preferred_element_type=jnp.float32)   # (TB*S, S) f32

    # ---- BatchNorm folded to the matmul-output side + linear1 bias, then ReLU (VPU, f32).
    h = jnp.maximum(raw.reshape(TB, S, S) * scale_ref[...][None]
                    + bias1_ref[...][None], 0.0)             # (TB, S, S) f32

    # ---- flatten (b, s, t) -> (b, s*S + t) (PyTorch .view order) and
    #      linear2: ONE (TB, S*S) x (S*S, 128) MXU matmul; lane-dense 128-wide store.
    hflat = h.reshape(TB, S * S).astype(mm_dtype)
    out = jnp.dot(hflat, w2p_ref[...], preferred_element_type=jnp.float32)
    out_ref[...] = out + b2p_ref[...]


def decoder_cnn_forward(x, params, *, block_b=1024, matmul_dtype=jnp.float32):
    """x: (B, S, D) float32 -> (B, NUM_EMOTIONS) float32 (training-mode BatchNorm)."""
    B, S, D = x.shape
    x = x.astype(jnp.float32)

    # --- One-pass BatchNorm1d batch statistics (biased variance) over the WHOLE batch;
    #     XLA fuses both reductions into a single read of x.
    # TODO(synk): running_mean/running_var momentum buffers (training bookkeeping) not updated.
    mean = x.mean(axis=(0, 2))                               # (S,)
    meansq = (x * x).mean(axis=(0, 2))                       # (S,)
    var = jnp.maximum(meansq - mean * mean, 0.0)             # clamp against cancellation

    gamma = params['gamma'].astype(jnp.float32)
    beta = params['beta'].astype(jnp.float32)
    scale = gamma * jax.lax.rsqrt(var + EPS)                 # (S,)
    shift = beta - mean * scale                              # (S,)

    # --- Fold BN to the matmul OUTPUT side:
    #     h[b,s,t] = scale[s] * (x[b,s,:] @ w1[t,:]) + (shift[s]*sum_d w1[t,d] + b1[t])
    w1 = params['w1'].astype(jnp.float32)                    # (S, D)
    b1 = params['b1'].astype(jnp.float32)                    # (S,)
    bias1 = shift[:, None] * w1.sum(axis=1)[None, :] + b1[None, :]        # (S, S)
    scale2d = scale.reshape(S, 1)                            # (S, 1)

    w1t = w1.T.astype(matmul_dtype)                          # (D, S)
    w2p = jnp.zeros((S * S, N_PAD), matmul_dtype).at[:, :NUM_EMOTIONS].set(
        params['w2'].T.astype(matmul_dtype))                 # (S*S, 128)
    b2p = jnp.zeros((1, N_PAD), jnp.float32).at[:, :NUM_EMOTIONS].set(
        params['b2'].reshape(1, NUM_EMOTIONS).astype(jnp.float32))        # (1, 128)

    # Stream x in the matmul dtype (halves x HBM read + x-block VMEM on the bf16 path).
    x_in = x.astype(matmul_dtype)

    # --- VMEM budget and batch-tile size (no jnp.pad: ragged last block handled by Pallas).
    try:
        vmem_cap = int(pltpu.get_tpu_info().vmem_capacity_bytes)
    except Exception:
        vmem_cap = 64 << 20                                  # conservative fallback (v7x)
    budget = max(16 << 20, int(vmem_cap * 0.75))

    TB = max(1, min(block_b, B))
    if TB < B:
        TB = min(B, _round_up(TB, 8))                        # out-block sublane alignment
    while TB > 8 and _estimate_vmem(TB, S, D, matmul_dtype) > budget:
        TB = max(8, _round_up(TB // 2, 8))
    # v7x megacore: keep >= 2 grid steps when the batch is big enough to split.
    if B >= 16 and pl.cdiv(B, TB) < 2:
        TB = _round_up(pl.cdiv(B, 2), 8)
    grid = (pl.cdiv(B, TB),)

    n_mm = jnp.dtype(matmul_dtype).itemsize
    cost = pl.CostEstimate(
        flops=2 * B * S * S * D + 2 * B * S * S * N_PAD,
        transcendentals=0,
        bytes_accessed=(B * S * D * n_mm + B * N_PAD * 4
                        + (D * S + S * S * N_PAD) * n_mm
                        + (S + S * S + 2 * N_PAD) * 4))

    grid_spec = pltpu.PrefetchScalarGridSpec(
        num_scalar_prefetch=0,
        grid=grid,
        in_specs=[
            pl.BlockSpec((TB, S, D), lambda i: (i, 0, 0)),           # x: tiled over batch
            pl.BlockSpec((S, 1), lambda i: (0, 0)),                  # BN scale (output-side)
            pl.BlockSpec((S, S), lambda i: (0, 0)),                  # folded BN shift + b1
            pl.BlockSpec((D, S), lambda i: (0, 0)),                  # w1^T
            pl.BlockSpec((S * S, N_PAD), lambda i: (0, 0)),          # w2 (padded, transposed)
            pl.BlockSpec((1, N_PAD), lambda i: (0, 0)),              # b2 (padded)
        ],
        out_specs=pl.BlockSpec((TB, N_PAD), lambda i: (i, 0)),
    )

    out = pl.pallas_call(
        decoder_kernel,
        out_shape=jax.ShapeDtypeStruct((B, N_PAD), jnp.float32),
        grid_spec=grid_spec,
        cost_estimate=cost,
        compiler_params=pltpu.CompilerParams(
            dimension_semantics=("parallel",),
            vmem_limit_bytes=int(budget)),
    )(x_in, scale2d, bias1, w1t, w2p, b2p)

    return out[:, :NUM_EMOTIONS]


def reference(x, params):
    """Pure-JAX reference mirroring the PyTorch forward (training-mode BN)."""
    B, S, D = x.shape
    mean = x.mean(axis=(0, 2), keepdims=True)
    var = ((x - mean) ** 2).mean(axis=(0, 2), keepdims=True)
    xbn = ((x - mean) / jnp.sqrt(var + EPS)
           * params['gamma'].reshape(1, S, 1) + params['beta'].reshape(1, S, 1))
    h = jax.nn.relu(jnp.einsum('bsd,td->bst', xbn, params['w1']) + params['b1'])
    flat = h.reshape(B, S * S)
    return flat @ params['w2'].T + params['b2']


if __name__ == "__main__":
    # Small shapes consistent with the module: batch=2, seq_len=8, input_size=32
    B, S, D = 2, 8, 32
    key = jax.random.PRNGKey(0)
    kx, k1, k2, k3, k4, kx2 = jax.random.split(key, 6)

    x = jax.random.normal(kx, (B, S, D), jnp.float32)

    # Deterministic parameter init mimicking PyTorch defaults.
    lim1 = 1.0 / math.sqrt(D)       # linear1 fan_in = input_size
    lim2 = 1.0 / math.sqrt(S * S)   # linear2 fan_in = seq_len*seq_len
    params = {
        'gamma': jnp.ones((S,), jnp.float32),            # BatchNorm weight
        'beta': jnp.zeros((S,), jnp.float32),            # BatchNorm bias
        'w1': jax.random.uniform(k1, (S, D), jnp.float32, -lim1, lim1),
        'b1': jax.random.uniform(k2, (S,), jnp.float32, -lim1, lim1),
        'w2': jax.random.uniform(k3, (NUM_EMOTIONS, S * S), jnp.float32, -lim2, lim2),
        'b2': jax.random.uniform(k4, (NUM_EMOTIONS,), jnp.float32, -lim2, lim2),
    }

    ref = jax.block_until_ready(reference(x, params))

    # f32 matmul path: tight correctness check against the pure-JAX reference.
    out = jax.block_until_ready(decoder_cnn_forward(x, params))
    assert out.shape == (B, NUM_EMOTIONS), out.shape
    assert jnp.allclose(out, ref, atol=5e-4, rtol=5e-4), (out, ref)

    # bf16 matmul-input path (production-recommended): loose sanity check.
    out_bf16 = jax.block_until_ready(
        decoder_cnn_forward(x, params, matmul_dtype=jnp.bfloat16))
    assert out_bf16.shape == (B, NUM_EMOTIONS), out_bf16.shape
    assert jnp.allclose(out_bf16, ref, atol=1e-1, rtol=1e-1), (out_bf16, ref)

    # Ragged-batch / multi-step-grid path (no jnp.pad; partial last block masked by Pallas).
    B2 = 20
    x2 = jax.random.normal(kx2, (B2, S, D), jnp.float32)
    ref2 = jax.block_until_ready(reference(x2, params))
    out2 = jax.block_until_ready(decoder_cnn_forward(x2, params, block_b=8))
    assert out2.shape == (B2, NUM_EMOTIONS), out2.shape
    assert jnp.allclose(out2, ref2, atol=5e-4, rtol=5e-4), (out2, ref2)

    print("KERNEL_OK")
</pallas_src>

<mosaic_0001>
module attributes {stable_mosaic.version = 11 : i64} {
  func.func @decoder_kernel(%arg0: i32, %arg1: memref<2x8x32xf32, #tpu.memory_space<vmem>>, %arg2: memref<8x1xf32, #tpu.memory_space<vmem>>, %arg3: memref<8x8xf32, #tpu.memory_space<vmem>>, %arg4: memref<32x8xf32, #tpu.memory_space<vmem>>, %arg5: memref<64x128xf32, #tpu.memory_space<vmem>>, %arg6: memref<1x128xf32, #tpu.memory_space<vmem>>, %arg7: memref<2x128xf32, #tpu.memory_space<vmem>>) attributes {dimension_semantics = [#tpu.dimension_semantics<parallel>], iteration_bounds = array<i64: 1>, scalar_prefetch = 0 : i64, scratch_operands = 0 : i64, tpu.core_type = #tpu.core_type<tc>, window_params = [{transform_indices = @transform_0, window_bounds = array<i64: 2, 8, 32>}, {pipeline_mode = #tpu.pipeline_mode<synchronous>, transform_indices = @transform_1, window_bounds = array<i64: 8, 1>}, {pipeline_mode = #tpu.pipeline_mode<synchronous>, transform_indices = @transform_2, window_bounds = array<i64: 8, 8>}, {pipeline_mode = #tpu.pipeline_mode<synchronous>, transform_indices = @transform_3, window_bounds = array<i64: 32, 8>}, {pipeline_mode = #tpu.pipeline_mode<synchronous>, transform_indices = @transform_4, window_bounds = array<i64: 64, 128>}, {pipeline_mode = #tpu.pipeline_mode<synchronous>, transform_indices = @transform_5, window_bounds = array<i64: 1, 128>}, {transform_indices = @transform_6, window_bounds = array<i64: 2, 128>}]} {
    %c0 = arith.constant 0 : index
    %c0_0 = arith.constant 0 : index
    %c0_1 = arith.constant 0 : index
    %0 = vector.load %arg1[%c0, %c0_0, %c0_1] : memref<2x8x32xf32, #tpu.memory_space<vmem>>, vector<2x8x32xf32>
    %1 = vector.shape_cast %0 : vector<2x8x32xf32> to vector<16x32xf32>
    %c0_2 = arith.constant 0 : index
    %c0_3 = arith.constant 0 : index
    %2 = vector.load %arg4[%c0_2, %c0_3] : memref<32x8xf32, #tpu.memory_space<vmem>>, vector<32x8xf32>
    %cst = arith.constant dense<0.000000e+00> : vector<16x8xf32>
    %3 = tpu.matmul %1, %2, %cst {dimension_numbers = #tpu.dot_dimension_numbers<[1], [0], [0], [1], [0, 0, 1, 1], [], []>} : vector<16x32xf32>, vector<32x8xf32>, vector<16x8xf32> -> vector<16x8xf32>
    %4 = vector.shape_cast %3 : vector<16x8xf32> to vector<2x8x8xf32>
    %c0_4 = arith.constant 0 : index
    %c0_5 = arith.constant 0 : index
    %5 = vector.load %arg2[%c0_4, %c0_5] : memref<8x1xf32, #tpu.memory_space<vmem>>, vector<8x1xf32>
    %6 = vector.shape_cast %5 : vector<8x1xf32> to vector<1x8x1xf32>
    %7 = vector.broadcast %6 : vector<1x8x1xf32> to vector<2x8x8xf32>
    %8 = arith.mulf %4, %7 : vector<2x8x8xf32>
    %c0_6 = arith.constant 0 : index
    %c0_7 = arith.constant 0 : index
    %9 = vector.load %arg3[%c0_6, %c0_7] : memref<8x8xf32, #tpu.memory_space<vmem>>, vector<8x8xf32>
    %10 = vector.shape_cast %9 : vector<8x8xf32> to vector<1x8x8xf32>
    %11 = vector.broadcast %10 : vector<1x8x8xf32> to vector<2x8x8xf32>
    %12 = arith.addf %8, %11 : vector<2x8x8xf32>
    %cst_8 = arith.constant 0.000000e+00 : f32
    %13 = vector.broadcast %cst_8 : f32 to vector<2x8x8xf32>
    %14 = arith.maximumf %12, %13 : vector<2x8x8xf32>
    %15 = vector.shape_cast %14 : vector<2x8x8xf32> to vector<2x64xf32>
    %c0_9 = arith.constant 0 : index
    %c0_10 = arith.constant 0 : index
    %16 = vector.load %arg5[%c0_9, %c0_10] : memref<64x128xf32, #tpu.memory_space<vmem>>, vector<64x128xf32>
    %cst_11 = arith.constant dense<0.000000e+00> : vector<2x128xf32>
    %17 = tpu.matmul %15, %16, %cst_11 {dimension_numbers = #tpu.dot_dimension_numbers<[1], [0], [0], [1], [0, 0, 1, 1], [], []>} : vector<2x64xf32>, vector<64x128xf32>, vector<2x128xf32> -> vector<2x128xf32>
    %c0_12 = arith.constant 0 : index
    %c0_13 = arith.constant 0 : index
    %18 = vector.load %arg6[%c0_12, %c0_13] : memref<1x128xf32, #tpu.memory_space<vmem>>, vector<1x128xf32>
    %19 = vector.broadcast %18 : vector<1x128xf32> to vector<2x128xf32>
    %20 = arith.addf %17, %19 : vector<2x128xf32>
    %c0_14 = arith.constant 0 : index
    %c0_15 = arith.constant 0 : index
    %21 = vector.load %arg7[%c0_14, %c0_15] : memref<2x128xf32, #tpu.memory_space<vmem>>, vector<2x128xf32>
    tpu.vector_store %arg7[%c0_14, %c0_15], %20 {strides = array<i32>} : memref<2x128xf32, #tpu.memory_space<vmem>>, vector<2x128xf32>,
    return
  }
  func.func @transform_0(%arg0: i32) -> (i32, i32, i32) {
    %c0_i32 = arith.constant 0 : i32
    %c0_i32_0 = arith.constant 0 : i32
    %c0_i32_1 = arith.constant 0 : i32
    return %arg0, %c0_i32, %c0_i32_0 : i32, i32, i32
  }
  func.func @transform_1(%arg0: i32) -> (i32, i32) {
    %c0_i32 = arith.constant 0 : i32
    %c0_i32_0 = arith.constant 0 : i32
    %c0_i32_1 = arith.constant 0 : i32
    return %c0_i32, %c0_i32_0 : i32, i32
  }
  func.func @transform_2(%arg0: i32) -> (i32, i32) {
    %c0_i32 = arith.constant 0 : i32
    %c0_i32_0 = arith.constant 0 : i32
    %c0_i32_1 = arith.constant 0 : i32
    return %c0_i32, %c0_i32_0 : i32, i32
  }
  func.func @transform_3(%arg0: i32) -> (i32, i32) {
    %c0_i32 = arith.constant 0 : i32
    %c0_i32_0 = arith.constant 0 : i32
    %c0_i32_1 = arith.constant 0 : i32
    return %c0_i32, %c0_i32_0 : i32, i32
  }
  func.func @transform_4(%arg0: i32) -> (i32, i32) {
    %c0_i32 = arith.constant 0 : i32
    %c0_i32_0 = arith.constant 0 : i32
    %c0_i32_1 = arith.constant 0 : i32
    return %c0_i32, %c0_i32_0 : i32, i32
  }
  func.func @transform_5(%arg0: i32) -> (i32, i32) {
    %c0_i32 = arith.constant 0 : i32
    %c0_i32_0 = arith.constant 0 : i32
    %c0_i32_1 = arith.constant 0 : i32
    return %c0_i32, %c0_i32_0 : i32, i32
  }
  func.func @transform_6(%arg0: i32) -> (i32, i32) {
    %c0_i32 = arith.constant 0 : i32
    %c0_i32_0 = arith.constant 0 : i32
    return %arg0, %c0_i32 : i32, i32
  }
}

</mosaic_0001>

<llo_original>
// kernel: tpu_custom_call.1
$region0: #{tpu_custom_call.1}
  #allocation0 [shape = 'u32[]', space=smem, size = 0x4, offset = 0x4, fixed_abs, tag = 'smem constant byte address 0x4 - core index']
  #allocation1 [shape = 'u32[72,128]{1,0:T(1,128)}', space=vmem, size = 0x9000, scoped, tag = 'internal scratch']
  %s0 = inlined_call_operand.vmem [shape: f32[2,8,32], index: 0, kind: input, shape index: {}]
  %s1 = inlined_call_operand.vmem [shape: f32[8,1], index: 1, kind: input, shape index: {}]
  %s2 = inlined_call_operand.vmem [shape: f32[8,8], index: 2, kind: input, shape index: {}]
  %s3 = inlined_call_operand.vmem [shape: f32[32,8], index: 3, kind: input, shape index: {}]
  %s4 = inlined_call_operand.hbm [shape: f32[64,128], index: 4, kind: input, shape index: {}]
  %s5 = inlined_call_operand.vmem [shape: f32[1,128], index: 5, kind: input, shape index: {}]
  %s6 = inlined_call_operand.hbm [shape: f32[2,128], index: 6, kind: output, shape index: {}]
  %s7 = sld [smem:[#allocation0]]
  $region38: #{tpu_custom_call.1} parent=0
    _
  %s9 = ssub.s32 1, %s7
  %s10 = scalar_select 0, %s9, %s7
  $region1: #{tpu_custom_call.1} parent=0
    #allocation2 [shape = 'u8[32768]{0}', space=vmem, size = 0x8000, scoped, tag = 'input window, operand 4, single buffered']
    #allocation3 [shape = 's32[1]{0}', space=sflag, size = 0x4, scoped, tag = 'scoped memory for tpu_custom_call.1']
    #allocation4 [shape = 's32[1]{0}', space=sflag, size = 0x4, scoped, tag = 'scoped memory for tpu_custom_call.1']
    #allocation5 [shape = 'u8[1024]{0}', space=vmem, size = 0x400, scoped, tag = 'output window, operand 0, single buffered']
    %11 = vsyncpa [#allocation3], 0
    %12 = vsyncpa [#allocation4], 0
    // Predicated region
    $region2: #{tpu_custom_call.1} parent=1 // pred_check
      _
    $region3: #{tpu_custom_call.1} parent=1 // pred_check_branch
      %14 = sbr.rel (0) target = $region5
    $region4: #{tpu_custom_call.1} parent=1 // pred_region
      _
    $region5: #{tpu_custom_call.1} parent=1 // pred_fallthru
      _
    // Predicated region
    $region6: #{tpu_custom_call.1} parent=1 // pred_check
      _
    $region7: #{tpu_custom_call.1} parent=1 // pred_check_branch
      %16 = sbr.rel (0) target = $region9
    $region8: #{tpu_custom_call.1} parent=1 // pred_region
      _
    $region9: #{tpu_custom_call.1} parent=1 // pred_fallthru
      _
    // Predicated region
    $region10: #{tpu_custom_call.1} parent=1 // pred_check
      _
    $region11: #{tpu_custom_call.1} parent=1 // pred_check_branch
      %18 = sbr.rel (0) target = $region13
    $region12: #{tpu_custom_call.1} parent=1 // pred_region
      _
    $region13: #{tpu_custom_call.1} parent=1 // pred_fallthru
      _
    // Predicated region
    $region14: #{tpu_custom_call.1} parent=1 // pred_check
      _
    $region15: #{tpu_custom_call.1} parent=1 // pred_check_branch
      %20 = sbr.rel (0) target = $region17
    $region16: #{tpu_custom_call.1} parent=1 // pred_region
      _
    $region17: #{tpu_custom_call.1} parent=1 // pred_fallthru
      _
    // Predicated region
    $region18: #{tpu_custom_call.1} parent=1 // pred_check
      _
    $region19: #{tpu_custom_call.1} parent=1 // pred_check_branch
      %22 = sbr.rel (0) target = $region21
    $region20: #{tpu_custom_call.1} parent=1 // pred_region
      %24 = vsyncadd [#allocation3], 0
      %s25 = sshll.u32 %s4, 4
      %s26 = int_to_ptr.hbm [resolvable:$true] %s25
      %s27 = sshll.u32 [#allocation2], 4
      %s28 = int_to_ptr.vmem [resolvable:$true] %s27
      %33 = dma.hbm_to_vmem [thread:$0]  %s26, 1024, %s28, [#allocation3], 128, 128, 8
    $region21: #{tpu_custom_call.1} parent=1 // pred_fallthru
      _
    // Predicated region
    $region22: #{tpu_custom_call.1} parent=1 // pred_check
      _
    $region23: #{tpu_custom_call.1} parent=1 // pred_check_branch
      %35 = sbr.rel (0) target = $region25
    $region24: #{tpu_custom_call.1} parent=1 // pred_region
      _
    $region25: #{tpu_custom_call.1} parent=1 // pred_fallthru
      _
    // Predicated region
    $region26: #{tpu_custom_call.1} parent=1 // pred_check
      _
    $region27: #{tpu_custom_call.1} parent=1 // pred_check_branch
      %37 = sbr.rel (0) target = $region29
    $region28: #{tpu_custom_call.1} parent=1 // pred_region
      %39 = dma.done [#allocation3], 1024
    $region29: #{tpu_custom_call.1} parent=1 // pred_fallthru
      _
    %v40 = vld [vmem:[%s0] sm:$0xff]
    %v41 = vld [vmem:[%s0 + $0x8] sm:$0xff]
    %v42 = vld [vmem:[%s3] sm:$0xff]
    %v43 = vld [vmem:[%s3 + $0x8] sm:$0xff]
    %v44 = vld [vmem:[%s3 + $0x10] sm:$0xff]
    %v45 = vld [vmem:[%s3 + $0x18] sm:$0xff]
    %vm46 = vcmask 261120
    %v48 = vsel %vm46, %v40, 0
    %v51 = vsel %vm46, %v41, 0
    %53 = vmatpush.msra.mxu0 0.0
    %54 = vmatpush.msra.mxu0 0.0
    %55 = vmatpush.msra.mxu0 0.0
    %56 = vmatpush.msra.mxu0 0.0
    %57 = vmatpush.msra.mxu0 0.0
    %58 = vmatpush.msra.mxu0 0.0
    %59 = vmatpush.msra.mxu0 0.0
    %60 = vmatpush.msra.mxu0 0.0
    %61 = vmatpush.msra.mxu0 0.0
    %62 = vmatpush.msra.mxu0 0.0
    %63 = vmatpush.msra.mxu0 0.0
    %64 = vmatpush.msra.mxu0 0.0
    %65 = vmatpush.msra.mxu0 %v45
    %66 = vmatpush.msra.mxu0 %v44
    %67 = vmatpush.msra.mxu0 %v43
    %68 = vmatpush.msra.mxu0 %v42
    %69 = vmatmul.f32.gmra.mxu0 %v48
    %v70 = vpop.f32.mrf.mxu0
    %v71 = vadd.f32 0.0, %v70
    %72 = vmatmul.f32.gmra.mxu0 %v51
    %v73 = vpop.f32.mrf.mxu0
    %v74 = vadd.f32 0.0, %v73
    %75 = vdwg.mxu0
    %v76 = vld [vmem:[%s1] sm:$0xff]
    %78 = vset.pattern.permute.xlu0 0
    %79 = vperm.xlu0 %78, %v76
    %v80 = vpop.permute.xlu0 %79
    %v82 = vmul.f32 %v71, %v80
    %v83 = vmul.f32 %v74, %v80
    %v84 = vld [vmem:[%s2] sm:$0xff]
    %v85 = vadd.f32 %v82, %v84
    %v86 = vadd.f32 %v83, %v84
    %v87 = vmax.f32 %v85, 0.0
    %v88 = vmax.f32 %v86, 0.0
    %v89 = vrot.slane %v87, 4
    %vm90 = vcmask 1047556
    %v91 = vsel %vm90, 0.0, %v89
    %v93 = vunpack.c.l.s4 1983009808
    %v94 = vunpack.c.0.s8 %v93
    %v95 = vperm.slane %v87, %v94
    %v97 = vunpack.c.l.s4 1983009808
    %v98 = vunpack.c.0.s8 %v97
    %v99 = vperm.slane %v91, %v98
    %v100 = vrot.slane %v88, 4
    %v101 = vsel %vm90, 0.0, %v100
    %v103 = vunpack.c.l.s4 1983009808
    %v104 = vunpack.c.0.s8 %v103
    %v105 = vperm.slane %v88, %v104
    %v107 = vunpack.c.l.s4 1983009808
    %v108 = vunpack.c.0.s8 %v107
    %v109 = vperm.slane %v101, %v108
    %v110 = vrot.slane %v105, 4
    %v111 = vsel %vm90, %v110, %v95
    %v112 = vrot.slane %v95, 4
    %v113 = vsel %vm90, %v105, %v112
    %v115 = vunpack.c.l.s4 1934713408
    %v116 = vunpack.c.0.s8 %v115
    %v117 = vperm.slane %v111, %v116
    %v119 = vunpack.c.l.s4 1934713408
    %v120 = vunpack.c.0.s8 %v119
    %v121 = vperm.slane %v113, %v120
    %v122 = vrot.slane %v109, 4
    %v123 = vsel %vm90, %v122, %v99
    %v124 = vrot.slane %v99, 4
    %v125 = vsel %vm90, %v109, %v124
    %v127 = vunpack.c.l.s4 1934713408
    %v128 = vunpack.c.0.s8 %v127
    %v129 = vperm.slane %v123, %v128
    %v131 = vunpack.c.l.s4 1934713408
    %v132 = vunpack.c.0.s8 %v131
    %v133 = vperm.slane %v125, %v132
    %v134 = vrot.slane %v117, 4
    %v135 = vsel %vm90, 0.0, %v134
    %v136 = vrot.slane %v121, 4
    %v137 = vsel %vm90, 0.0, %v136
    %v138 = vrot.slane %v129, 4
    %v139 = vsel %vm90, 0.0, %v138
    %v140 = vrot.slane %v133, 4
    %v141 = vsel %vm90, 0.0, %v140
    %143 = vrot.lane.b32.xlu0 %v135, 8
    %v144 = vpop.permute.xlu0 %143
    %147 = vrot.lane.b32.xlu0 %v121, 16
    %v148 = vpop.permute.xlu0 %147
    %151 = vrot.lane.b32.xlu0 %v137, 24
    %v152 = vpop.permute.xlu0 %151
    %155 = vrot.lane.b32.xlu0 %v129, 32
    %v156 = vpop.permute.xlu0 %155
    %159 = vrot.lane.b32.xlu0 %v139, 40
    %v160 = vpop.permute.xlu0 %159
    %163 = vrot.lane.b32.xlu0 %v133, 48
    %v164 = vpop.permute.xlu0 %163
    %167 = vrot.lane.b32.xlu0 %v141, 56
    %v168 = vpop.permute.xlu0 %167
    %vm170 = vcmask 64512
    %v171 = vsel %vm170, %v117, %v144
    %vm172 = vcmask 130048
    %v173 = vsel %vm172, %v171, %v148
    %vm174 = vcmask 195584
    %v175 = vsel %vm174, %v173, %v152
    %v176 = vsel %vm46, %v175, %v156
    %vm177 = vcmask 326656
    %v178 = vsel %vm177, %v176, %v160
    %vm179 = vcmask 392192
    %v180 = vsel %vm179, %v178, %v164
    %vm181 = vcmask 457728
    %v182 = vsel %vm181, %v180, %v168
    %v183 = vld [vmem:[#allocation2] sm:$0xff]
    %v184 = vld [vmem:[#allocation2 + $0x8] sm:$0xff]
    %v185 = vld [vmem:[#allocation2 + $0x10] sm:$0xff]
    %v186 = vld [vmem:[#allocation2 + $0x18] sm:$0xff]
    %v187 = vld [vmem:[#allocation2 + $0x20] sm:$0xff]
    %v188 = vld [vmem:[#allocation2 + $0x28] sm:$0xff]
    %v189 = vld [vmem:[#allocation2 + $0x30] sm:$0xff]
    %v190 = vld [vmem:[#allocation2 + $0x38] sm:$0xff]
    %v191 = vld [vmem:[%s5] sm:$0x1]
    %v193 = vperm.slane %v191, 0
    %vm195 = vcmask 523264
    %v197 = vsel %vm195, %v182, 0
    %199 = vmatpush.msra.mxu0 0.0
    %200 = vmatpush.msra.mxu0 0.0
    %201 = vmatpush.msra.mxu0 0.0
    %202 = vmatpush.msra.mxu0 0.0
    %203 = vmatpush.msra.mxu0 0.0
    %204 = vmatpush.msra.mxu0 0.0
    %205 = vmatpush.msra.mxu0 0.0
    %206 = vmatpush.msra.mxu0 0.0
    %207 = vmatpush.msra.mxu0 %v190
    %208 = vmatpush.msra.mxu0 %v189
    %209 = vmatpush.msra.mxu0 %v188
    %210 = vmatpush.msra.mxu0 %v187
    %211 = vmatpush.msra.mxu0 %v186
    %212 = vmatpush.msra.mxu0 %v185
    %213 = vmatpush.msra.mxu0 %v184
    %214 = vmatpush.msra.mxu0 %v183
    %215 = vmatmul.f32.gmra.mxu0 %v197
    %v216 = vpop.f32.mrf.mxu0
    %v217 = vadd.f32 %v193, %v216
    %218 = vdwg.mxu0
    %219 = vst [vmem:[#allocation5] sm:$0x3] %v217
    // Predicated region
    $region30: #{tpu_custom_call.1} parent=1 // pred_check
      _
    $region31: #{tpu_custom_call.1} parent=1 // pred_check_branch
      %221 = sbr.rel (0) target = $region33
    $region32: #{tpu_custom_call.1} parent=1 // pred_region
      %223 = vsyncadd [#allocation4], 0
      %s225 = sshll.u32 [#allocation5], 4
      %s226 = int_to_ptr.vmem [resolvable:$true] %s225
      %s227 = sshll.u32 %s6, 4
      %s228 = int_to_ptr.hbm [resolvable:$true] %s227
      %230 = dma.vmem_to_hbm [thread:$0]  %s226, 32, %s228, [#allocation4]
    $region33: #{tpu_custom_call.1} parent=1 // pred_fallthru
      _
    // Predicated region
    $region34: #{tpu_custom_call.1} parent=1 // pred_check
      _
    $region35: #{tpu_custom_call.1} parent=1 // pred_check_branch
      %232 = sbr.rel (0) target = $region37
    $region36: #{tpu_custom_call.1} parent=1 // pred_region
      %234 = dma.done [#allocation4], 32
    $region37: #{tpu_custom_call.1} parent=1 // pred_fallthru
      _
    %235 = vsyncpa [#allocation3], 1
    %236 = vsyncpa [#allocation4], 1

</llo_original>
